<compile_context>
chip_gen: v5e
topology: v5e:2x2
jax: 0.10.0
libtpu: 0.0.40
codegen_flags: <defaults>
</compile_context>

<pallas_src>
import functools

import jax
import jax.numpy as jnp
from jax import lax
from jax.experimental import pallas as pl
from jax.experimental.pallas import tpu as pltpu

EPS = 1e-5


def _round_up(v, m):
    return ((v + m - 1) // m) * m


def _cin1d_kernel(*refs, has_bias):
    if has_bias:
        y_ref, x_ref, g_ref, b_ref, o_ref = refs
    else:
        y_ref, x_ref, g_ref, o_ref = refs
        b_ref = None

    x = x_ref[...]
    if x.dtype != jnp.float32:
        x = x.astype(jnp.float32)
    tile_n, c = x.shape
    lp = g_ref.shape[0]

    # Per-row instance norm over the feature (lane) axis.  Two-pass (centered)
    # variance: the extra XLU reduce is free here and avoids the catastrophic
    # cancellation of E[x^2] - mean^2 when |mean| >> std.
    inv_c = jnp.float32(1.0 / c)
    mean = jnp.sum(x, axis=-1, keepdims=True) * inv_c
    centered = x - mean
    var = jnp.sum(centered * centered, axis=-1, keepdims=True) * inv_c
    h = centered * lax.rsqrt(var + EPS)

    # Fused embedding gather: one-hot (tile_n, Lp) x (Lp, C) matmul on the
    # otherwise-idle MXU.  1.0 * (f32 table entry) is exact, so no precision is
    # lost relative to a real gather.
    onehot = (y_ref[...] == lax.broadcasted_iota(jnp.int32, (tile_n, lp), 1)
              ).astype(jnp.float32)
    gamma = jnp.dot(onehot, g_ref[...], preferred_element_type=jnp.float32)
    out = gamma * h
    if has_bias:
        beta = jnp.dot(onehot, b_ref[...], preferred_element_type=jnp.float32)
        out = out + beta

    o_ref[...] = out.astype(o_ref.dtype)


def prepare_tables(embed_weight, num_features, bias=True):
    """Build the f32 gamma / beta lookup tables once per weight (hoisted out of
    the per-call path).  Rows are zero-padded to a multiple of 128 so the
    one-hot contraction dim is lane-dense."""
    embed_weight = jnp.asarray(embed_weight, dtype=jnp.float32)
    L = embed_weight.shape[0]
    Lp = _round_up(L, 128)
    gamma = embed_weight[:, :num_features]
    gamma_tab = jnp.zeros((Lp, num_features), jnp.float32).at[:L].set(gamma)
    if bias:
        beta = embed_weight[:, num_features:2 * num_features]
        beta_tab = jnp.zeros((Lp, num_features), jnp.float32).at[:L].set(beta)
    else:
        beta_tab = None
    return gamma_tab, beta_tab


def conditional_instance_norm_1d(x, y, gamma_tab, beta_tab=None):
    """x: (N, C) float, y: (N,) int class ids, tables from prepare_tables()."""
    assert x.ndim == 2, (
        "kernel implements the (N, C) path implied by `gamma.view(-1, C) * h`; "
        "a 3-D (N, C, L) InstanceNorm1d input is out of scope")
    N, C = x.shape
    Lp = gamma_tab.shape[0]
    has_bias = beta_tab is not None
    n_tabs = 2 if has_bias else 1

    # Dtype-aware sublane granularity for the row tile (f32: 8, bf16: 16, i8: 32).
    itemsize = jnp.dtype(x.dtype).itemsize
    sub = {4: 8, 2: 16, 1: 32}.get(itemsize, 8)

    # Row-tile selection: ~512 rows already sits at ~85% of the HBM roofline,
    # and >= 4 grid steps keeps both v7x TensorCores double-buffered (and gives
    # the single-core v5e/v6e pipeline prefetch + writeback work every step).
    t = min(512, _round_up(N, sub))
    if N >= 4 * sub:
        t = min(t, _round_up(pl.cdiv(N, 4), sub))
    t = max(sub, t)

    # Honest VMEM estimate: double-buffered x/out streams, the (t, 1) int32 y
    # tile (lane-padded to 128 lanes in VMEM), the tables (2 pipeline buffers;
    # constant index_map so they are DMA'd only once), plus the in-kernel
    # temporaries (f32 x / centered / h, one-hot, gamma/beta).
    def vmem_est(tt):
        xo_stream = 2 * 2 * tt * C * itemsize          # x + out, double-buffered
        y_stream = 2 * tt * 128 * 4                    # y ids, lane-padded
        tables = 2 * n_tabs * Lp * C * 4
        temps = tt * Lp * 4 + (3 + n_tabs) * tt * C * 4
        return xo_stream + y_stream + tables + temps

    budget = 24 << 20   # modest: inside v5e/v6e scoped VMEM, well below v7x 64 MiB/TC
    while t > sub and vmem_est(t) > budget:
        t = max(sub, _round_up(t // 2, sub))

    grid = (pl.cdiv(N, t),)     # ragged N: partial last block is masked on store
    vmem_limit = int(min(max(vmem_est(t) + (8 << 20), 16 << 20), 40 << 20))

    in_specs = [
        pl.BlockSpec((t, 1), lambda i: (i, 0)),    # class ids
        pl.BlockSpec((t, C), lambda i: (i, 0)),    # x rows (full-C last dim, no padding)
        pl.BlockSpec((Lp, C), lambda i: (0, 0)),   # gamma table (constant index: fetched once)
    ]
    args = [y.reshape(N, 1).astype(jnp.int32), x, gamma_tab]
    if has_bias:
        in_specs.append(pl.BlockSpec((Lp, C), lambda i: (0, 0)))  # beta table
        args.append(beta_tab)

    return pl.pallas_call(
        functools.partial(_cin1d_kernel, has_bias=has_bias),
        out_shape=jax.ShapeDtypeStruct((N, C), x.dtype),
        grid=grid,
        in_specs=in_specs,
        out_specs=pl.BlockSpec((t, C), lambda i: (i, 0)),
        compiler_params=pltpu.CompilerParams(
            dimension_semantics=("parallel",),
            vmem_limit_bytes=vmem_limit,
        ),
    )(*args)


_cin1d_jit = jax.jit(conditional_instance_norm_1d)


def _reference(x, y, embed_weight, num_features, bias=True):
    emb = embed_weight[y]
    if bias:
        gamma, beta = emb[:, :num_features], emb[:, num_features:]
    else:
        gamma, beta = emb, jnp.zeros_like(emb)
    mean = jnp.mean(x, axis=-1, keepdims=True)
    var = jnp.mean((x - mean) ** 2, axis=-1, keepdims=True)
    h = (x - mean) / jnp.sqrt(var + EPS)
    return gamma * h + beta


if __name__ == "__main__":
    key = jax.random.PRNGKey(0)
    k1, k2, k3, k4, k5, k6 = jax.random.split(key, 6)

    # --- bias=True: ragged batch (N not a multiple of the row tile), 4-step grid
    N, C, L = 50, 128, 16
    x = jax.random.normal(k1, (N, C), dtype=jnp.float32)
    y = jax.random.randint(k2, (N,), 0, L, dtype=jnp.int32)
    # PyTorch init: embed.weight[:, :C].uniform_(); embed.weight[:, C:].zero_()
    embed_weight = jnp.concatenate(
        [jax.random.uniform(k3, (L, C), dtype=jnp.float32),
         jnp.zeros((L, C), jnp.float32)], axis=-1)             # (L, 2C)

    gamma_tab, beta_tab = prepare_tables(embed_weight, C, bias=True)
    out = jax.block_until_ready(_cin1d_jit(x, y, gamma_tab, beta_tab))
    ref = _reference(x, y, embed_weight, C, bias=True)
    assert out.shape == (N, C)
    assert jnp.allclose(out, ref, atol=1e-4, rtol=1e-4), "bias=True mismatch vs reference"

    # --- bias=False: gamma-only table, 3-step grid with ragged last block -----
    N2, C2, L2 = 40, 128, 10
    x2 = jax.random.normal(k4, (N2, C2), dtype=jnp.float32)
    y2 = jax.random.randint(k5, (N2,), 0, L2, dtype=jnp.int32)
    embed_weight2 = jax.random.uniform(k6, (L2, C2), dtype=jnp.float32)  # (L, C)

    gamma_tab2, _ = prepare_tables(embed_weight2, C2, bias=False)
    out2 = jax.block_until_ready(_cin1d_jit(x2, y2, gamma_tab2, None))
    ref2 = _reference(x2, y2, embed_weight2, C2, bias=False)
    assert out2.shape == (N2, C2)
    assert jnp.allclose(out2, ref2, atol=1e-4, rtol=1e-4), "bias=False mismatch vs reference"

    print("KERNEL_OK")
</pallas_src>

<mosaic_0001>
module attributes {stable_mosaic.version = 11 : i64} {
  func.func @_cin1d_kernel(%arg0: i32, %arg1: memref<16x1xi32, #tpu.memory_space<vmem>>, %arg2: memref<16x128xf32, #tpu.memory_space<vmem>>, %arg3: memref<128x128xf32, #tpu.memory_space<vmem>>, %arg4: memref<128x128xf32, #tpu.memory_space<vmem>>, %arg5: memref<16x128xf32, #tpu.memory_space<vmem>>) attributes {dimension_semantics = [#tpu.dimension_semantics<parallel>], iteration_bounds = array<i64: 4>, scalar_prefetch = 0 : i64, scratch_operands = 0 : i64, tpu.core_type = #tpu.core_type<tc>, window_params = [{transform_indices = @transform_0, window_bounds = array<i64: 16, 1>}, {transform_indices = @transform_1, window_bounds = array<i64: 16, 128>}, {pipeline_mode = #tpu.pipeline_mode<synchronous>, transform_indices = @transform_2, window_bounds = array<i64: 128, 128>}, {pipeline_mode = #tpu.pipeline_mode<synchronous>, transform_indices = @transform_3, window_bounds = array<i64: 128, 128>}, {transform_indices = @transform_4, window_bounds = array<i64: 16, 128>}]} {
    %c0 = arith.constant 0 : index
    %c0_0 = arith.constant 0 : index
    %0 = vector.load %arg2[%c0, %c0_0] : memref<16x128xf32, #tpu.memory_space<vmem>>, vector<16x128xf32>
    %cst = arith.constant dense<0.000000e+00> : vector<16xf32>
    %1 = vector.multi_reduction <add>, %0, %cst [1] : vector<16x128xf32> to vector<16xf32>
    %2 = vector.shape_cast %1 : vector<16xf32> to vector<16x1xf32>
    %cst_1 = arith.constant 7.812500e-03 : f32
    %3 = vector.broadcast %cst_1 : f32 to vector<16x1xf32>
    %4 = arith.mulf %2, %3 : vector<16x1xf32>
    %5 = vector.broadcast %4 : vector<16x1xf32> to vector<16x128xf32>
    %6 = arith.subf %0, %5 : vector<16x128xf32>
    %7 = arith.mulf %6, %6 : vector<16x128xf32>
    %cst_2 = arith.constant dense<0.000000e+00> : vector<16xf32>
    %8 = vector.multi_reduction <add>, %7, %cst_2 [1] : vector<16x128xf32> to vector<16xf32>
    %9 = vector.shape_cast %8 : vector<16xf32> to vector<16x1xf32>
    %cst_3 = arith.constant 7.812500e-03 : f32
    %10 = vector.broadcast %cst_3 : f32 to vector<16x1xf32>
    %11 = arith.mulf %9, %10 : vector<16x1xf32>
    %cst_4 = arith.constant 9.99999974E-6 : f32
    %12 = vector.broadcast %cst_4 : f32 to vector<16x1xf32>
    %13 = arith.addf %11, %12 : vector<16x1xf32>
    %14 = math.rsqrt %13 : vector<16x1xf32>
    %15 = vector.broadcast %14 : vector<16x1xf32> to vector<16x128xf32>
    %16 = arith.mulf %6, %15 : vector<16x128xf32>
    %c0_5 = arith.constant 0 : index
    %c0_6 = arith.constant 0 : index
    %17 = vector.load %arg1[%c0_5, %c0_6] : memref<16x1xi32, #tpu.memory_space<vmem>>, vector<16x1xi32>
    %18 = tpu.iota {dimensions = array<i32: 1>} : vector<16x128xi32>
    %19 = vector.broadcast %17 : vector<16x1xi32> to vector<16x128xi32>
    %20 = arith.cmpi eq, %19, %18 : vector<16x128xi32>
    %21 = arith.extui %20 : vector<16x128xi1> to vector<16x128xi32>
    %22 = arith.sitofp %21 : vector<16x128xi32> to vector<16x128xf32>
    %c0_7 = arith.constant 0 : index
    %c0_8 = arith.constant 0 : index
    %23 = vector.load %arg3[%c0_7, %c0_8] : memref<128x128xf32, #tpu.memory_space<vmem>>, vector<128x128xf32>
    %cst_9 = arith.constant dense<0.000000e+00> : vector<16x128xf32>
    %24 = tpu.matmul %22, %23, %cst_9 {dimension_numbers = #tpu.dot_dimension_numbers<[1], [0], [0], [1], [0, 0, 1, 1], [], []>} : vector<16x128xf32>, vector<128x128xf32>, vector<16x128xf32> -> vector<16x128xf32>
    %25 = arith.mulf %24, %16 : vector<16x128xf32>
    %c0_10 = arith.constant 0 : index
    %c0_11 = arith.constant 0 : index
    %26 = vector.load %arg4[%c0_10, %c0_11] : memref<128x128xf32, #tpu.memory_space<vmem>>, vector<128x128xf32>
    %cst_12 = arith.constant dense<0.000000e+00> : vector<16x128xf32>
    %27 = tpu.matmul %22, %26, %cst_12 {dimension_numbers = #tpu.dot_dimension_numbers<[1], [0], [0], [1], [0, 0, 1, 1], [], []>} : vector<16x128xf32>, vector<128x128xf32>, vector<16x128xf32> -> vector<16x128xf32>
    %28 = arith.addf %25, %27 : vector<16x128xf32>
    %c0_13 = arith.constant 0 : index
    %c0_14 = arith.constant 0 : index
    %29 = vector.load %arg5[%c0_13, %c0_14] : memref<16x128xf32, #tpu.memory_space<vmem>>, vector<16x128xf32>
    tpu.vector_store %arg5[%c0_13, %c0_14], %28 {strides = array<i32>} : memref<16x128xf32, #tpu.memory_space<vmem>>, vector<16x128xf32>,
    return
  }
  func.func @transform_0(%arg0: i32) -> (i32, i32) {
    %c0_i32 = arith.constant 0 : i32
    %c0_i32_0 = arith.constant 0 : i32
    return %arg0, %c0_i32 : i32, i32
  }
  func.func @transform_1(%arg0: i32) -> (i32, i32) {
    %c0_i32 = arith.constant 0 : i32
    %c0_i32_0 = arith.constant 0 : i32
    return %arg0, %c0_i32 : i32, i32
  }
  func.func @transform_2(%arg0: i32) -> (i32, i32) {
    %c0_i32 = arith.constant 0 : i32
    %c0_i32_0 = arith.constant 0 : i32
    %c0_i32_1 = arith.constant 0 : i32
    return %c0_i32, %c0_i32_0 : i32, i32
  }
  func.func @transform_3(%arg0: i32) -> (i32, i32) {
    %c0_i32 = arith.constant 0 : i32
    %c0_i32_0 = arith.constant 0 : i32
    %c0_i32_1 = arith.constant 0 : i32
    return %c0_i32, %c0_i32_0 : i32, i32
  }
  func.func @transform_4(%arg0: i32) -> (i32, i32) {
    %c0_i32 = arith.constant 0 : i32
    %c0_i32_0 = arith.constant 0 : i32
    return %arg0, %c0_i32 : i32, i32
  }
}

</mosaic_0001>

<llo_original>
// kernel: conditional_instance_norm_1d.1
$region0: #{conditional_instance_norm_1d.1}
  #allocation0 [shape = 'u32[]', space=smem, size = 0x4, offset = 0x4, fixed_abs, tag = 'smem constant byte address 0x4 - core index']
  #allocation1 [shape = 'u32[72,128]{1,0:T(1,128)}', space=vmem, size = 0x9000, scoped, tag = 'internal scratch']
  %s0 = inlined_call_operand.vmem [shape: s32[50,1], index: 0, kind: input, shape index: {}]
  %s1 = inlined_call_operand.vmem [shape: f32[50,128], index: 1, kind: input, shape index: {}]
  %s2 = inlined_call_operand.hbm [shape: f32[128,128], index: 2, kind: input, shape index: {}]
  %s3 = inlined_call_operand.hbm [shape: f32[128,128], index: 3, kind: input, shape index: {}]
  %s4 = inlined_call_operand.hbm [shape: f32[50,128], index: 4, kind: output, shape index: {}]
  %s5 = sld [smem:[#allocation0]]
  $region57: #{conditional_instance_norm_1d.1} parent=0
    _
  %s7 = ssub.s32 1, %s5
  %s8 = scalar_select 0, %s7, %s5
  $region1: #{conditional_instance_norm_1d.1} parent=0
    #allocation2 [shape = 'u8[65536]{0}', space=vmem, size = 0x10000, scoped, tag = 'input window, operand 2, single buffered']
    #allocation3 [shape = 's32[2]{0}', space=sflag, size = 0x8, scoped, tag = 'scoped memory for conditional_instance_norm_1d.1']
    #allocation4 [shape = 's32[2]{0}', space=sflag, size = 0x8, scoped, tag = 'scoped memory for conditional_instance_norm_1d.1']
    #allocation5 [shape = 'u8[65536]{0}', space=vmem, size = 0x10000, scoped, tag = 'input window, operand 3, single buffered']
    #allocation6 [shape = 's32[1]{0}', space=sflag, size = 0x4, scoped, tag = 'scoped memory for conditional_instance_norm_1d.1']
    #allocation7 [shape = 'u8[16384]{0}', space=vmem, size = 0x4000, scoped, tag = 'output window, operand 0']
    %9 = vsyncpa [#allocation3], 0
    %10 = vsyncpa [#allocation6], 0
    %11 = vsyncpa [#allocation4], 0
    %s12 = scalar_lea.sflag [#allocation4], 1
    %13 = vsyncpa %s12, 0
    loop: start=0, step=1, limit=6
    $region2: #{conditional_instance_norm_1d.1} parent=1 // loop_pre_header
      _
    $region3: #{conditional_instance_norm_1d.1} parent=1 // loop_header
      %s15 = sphi 0, %s19
      %p16 = scmp.ge.s32.totalorder %s15, 6
      %s25 = sphi 0, %s27
      %s28 = sphi 0, %s25
      %s29 = sphi 0, %s28
      %s45 = sphi 0, %s29
      %s51 = sphi 0, %s53
      %s54 = sphi 0, %s51
      %s55 = sphi 0, %s54
      %s71 = sphi 0, %s55
      %s75 = sphi 0, %s75
      %s77 = sphi 0, %s75
      %s78 = sphi 0, %s77
      %s92 = sphi 0, %s78
      %s96 = sphi 0, %s96
      %s98 = sphi 0, %s96
      %s99 = sphi 0, %s98
      %s113 = sphi 0, %s99
      %s119 = sphi 0, %s121
      %s122 = sphi 0, %s119
      %s123 = sphi 0, %s122
      %s139 = sphi 0, %s123
    $region4: #{conditional_instance_norm_1d.1} parent=1 // loop_header_branch
      %18 = sbr.rel (%p16) target = $region8
    $region5: #{conditional_instance_norm_1d.1} parent=1 // loop_body
      %s20 = ssub.s32 %s15, 1
      %s21 = ssub.s32 %s15, 2
      %s22 = sadd.s32 %s15, 1
      %s23 = ssub.s32 %s15, %s22
      %p24 = scmp.eq.s32.totalorder %s23, 0
      %s26 = sadd.s32 %s25, 1
      %s27 = scalar_select %p24, %s25, %s26
      %p30 = pneg %p24
      %p31 = scmp.eq.s32.totalorder %s15, 3
      %p32 = por %p30, %p31
      %p33 = scmp.ne.s32.totalorder %s25, %s28
      %p34 = scmp.eq.s32.totalorder %s15, 0
      %p35 = por %p33, %p34
      %p36 = scmp.ne.s32.totalorder %s25, %s28
      %p37 = scmp.eq.s32.totalorder %s20, 3
      %p38 = por %p36, %p37
      %p39 = scmp.ne.s32.totalorder %s28, %s29
      %p40 = scmp.eq.s32.totalorder %s20, 0
      %p41 = por %p39, %p40
      %p42 = scmp.ne.s32.totalorder %s28, %s29
      %p43 = scmp.eq.s32.totalorder %s21, 3
      %p44 = por %p42, %p43
      %p46 = scmp.ne.s32.totalorder %s29, %s45
      %p47 = scmp.eq.s32.totalorder %s21, 0
      %p48 = por %p46, %p47
      %s49 = ssub.s32 %s15, %s22
      %p50 = scmp.eq.s32.totalorder %s49, 0
      %s52 = sadd.s32 %s51, 1
      %s53 = scalar_select %p50, %s51, %s52
      %p56 = pneg %p50
      %p57 = scmp.eq.s32.totalorder %s15, 3
      %p58 = por %p56, %p57
      %p59 = scmp.ne.s32.totalorder %s51, %s54
      %p60 = scmp.eq.s32.totalorder %s15, 0
      %p61 = por %p59, %p60
      %p62 = scmp.ne.s32.totalorder %s51, %s54
      %p63 = scmp.eq.s32.totalorder %s20, 3
      %p64 = por %p62, %p63
      %p65 = scmp.ne.s32.totalorder %s54, %s55
      %p66 = scmp.eq.s32.totalorder %s20, 0
      %p67 = por %p65, %p66
      %p68 = scmp.ne.s32.totalorder %s54, %s55
      %p69 = scmp.eq.s32.totalorder %s21, 3
      %p70 = por %p68, %p69
      %p72 = scmp.ne.s32.totalorder %s55, %s71
      %p73 = scmp.eq.s32.totalorder %s21, 0
      %p74 = por %p72, %p73
      %s76 = sadd.s32 %s75, 1
      %p79 = scmp.eq.s32.totalorder %s15, 3
      %p80 = scmp.ne.s32.totalorder %s75, %s77
      %p81 = scmp.eq.s32.totalorder %s15, 0
      %p82 = por %p80, %p81
      %p83 = scmp.ne.s32.totalorder %s75, %s77
      %p84 = scmp.eq.s32.totalorder %s20, 3
      %p85 = por %p83, %p84
      %p86 = scmp.ne.s32.totalorder %s77, %s78
      %p87 = scmp.eq.s32.totalorder %s20, 0
      %p88 = por %p86, %p87
      %p89 = scmp.ne.s32.totalorder %s77, %s78
      %p90 = scmp.eq.s32.totalorder %s21, 3
      %p91 = por %p89, %p90
      %p93 = scmp.ne.s32.totalorder %s78, %s92
      %p94 = scmp.eq.s32.totalorder %s21, 0
      %p95 = por %p93, %p94
      %s97 = sadd.s32 %s96, 1
      %p100 = scmp.eq.s32.totalorder %s15, 3
      %p101 = scmp.ne.s32.totalorder %s96, %s98
      %p102 = scmp.eq.s32.totalorder %s15, 0
      %p103 = por %p101, %p102
      %p104 = scmp.ne.s32.totalorder %s96, %s98
      %p105 = scmp.eq.s32.totalorder %s20, 3
      %p106 = por %p104, %p105
      %p107 = scmp.ne.s32.totalorder %s98, %s99
      %p108 = scmp.eq.s32.totalorder %s20, 0
      %p109 = por %p107, %p108
      %p110 = scmp.ne.s32.totalorder %s98, %s99
      %p111 = scmp.eq.s32.totalorder %s21, 3
      %p112 = por %p110, %p111
      %p114 = scmp.ne.s32.totalorder %s99, %s113
      %p115 = scmp.eq.s32.totalorder %s21, 0
      %p116 = por %p114, %p115
      %s117 = ssub.s32 %s15, %s22
      %p118 = scmp.eq.s32.totalorder %s117, 0
      %s120 = sadd.s32 %s119, 1
      %s121 = scalar_select %p118, %s119, %s120
      %p124 = pneg %p118
      %p125 = scmp.eq.s32.totalorder %s15, 3
      %p126 = por %p124, %p125
      %p127 = scmp.ne.s32.totalorder %s119, %s122
      %p128 = scmp.eq.s32.totalorder %s15, 0
      %p129 = por %p127, %p128
      %p130 = scmp.ne.s32.totalorder %s119, %s122
      %p131 = scmp.eq.s32.totalorder %s20, 3
      %p132 = por %p130, %p131
      %p133 = scmp.ne.s32.totalorder %s122, %s123
      %p134 = scmp.eq.s32.totalorder %s20, 0
      %p135 = por %p133, %p134
      %p136 = scmp.ne.s32.totalorder %s122, %s123
      %p137 = scmp.eq.s32.totalorder %s21, 3
      %p138 = por %p136, %p137
      %p140 = scmp.ne.s32.totalorder %s123, %s139
      %p141 = scmp.eq.s32.totalorder %s21, 0
      %p142 = por %p140, %p141
      %p143 = scmp.le.s32.totalorder 1, %s15
      %p144 = scmp.lt.s32.totalorder %s15, 5
      %p145 = pnand %p143, %p144
      %p146 = pneg %p145
      // Predicated region
      $region9: #{conditional_instance_norm_1d.1} parent=5 // pred_check
        _
      $region10: #{conditional_instance_norm_1d.1} parent=5 // pred_check_branch
        %148 = sbr.rel (%p145) target = $region12
      $region11: #{conditional_instance_norm_1d.1} parent=5 // pred_region
        %s149 = ssub.s32 %s15, 1
        // Predicated region
        $region13: #{conditional_instance_norm_1d.1} parent=11 // pred_check
          %p150 = pneg %p88
        $region14: #{conditional_instance_norm_1d.1} parent=11 // pred_check_branch
          %152 = sbr.rel (%p150) target = $region16
        $region15: #{conditional_instance_norm_1d.1} parent=11 // pred_region
          %154 = vsyncadd [#allocation3], 0
          %s155 = sshll.u32 %s2, 4
          %s156 = int_to_ptr.hbm [resolvable:$true] %s155
          %s157 = sshll.u32 [#allocation2], 4
          %s158 = int_to_ptr.vmem [resolvable:$true] %s157
          %163 = dma.hbm_to_vmem [thread:$0]  %s156, 2048, %s158, [#allocation3], 128, 128, 8
        $region16: #{conditional_instance_norm_1d.1} parent=11 // pred_fallthru
          _
        // Predicated region
        $region17: #{conditional_instance_norm_1d.1} parent=11 // pred_check
          %p164 = pneg %p109
        $region18: #{conditional_instance_norm_1d.1} parent=11 // pred_check_branch
          %166 = sbr.rel (%p164) target = $region20
        $region19: #{conditional_instance_norm_1d.1} parent=11 // pred_region
          %168 = vsyncadd [#allocation6], 0
          %s169 = sshll.u32 %s3, 4
          %s170 = int_to_ptr.hbm [resolvable:$true] %s169
          %s171 = sshll.u32 [#allocation5], 4
          %s172 = int_to_ptr.vmem [resolvable:$true] %s171
          %177 = dma.hbm_to_vmem [thread:$0]  %s170, 2048, %s172, [#allocation6], 128, 128, 8
        $region20: #{conditional_instance_norm_1d.1} parent=11 // pred_fallthru
          _
      $region12: #{conditional_instance_norm_1d.1} parent=5 // pred_fallthru
        _
      %p178 = scmp.lt.s32.totalorder %s15, 4
      // Predicated region
      $region21: #{conditional_instance_norm_1d.1} parent=5 // pred_check
        %p179 = pneg %p178
      $region22: #{conditional_instance_norm_1d.1} parent=5 // pred_check_branch
        %181 = sbr.rel (%p179) target = $region24
      $region23: #{conditional_instance_norm_1d.1} parent=5 // pred_region
        // Predicated region
        $region25: #{conditional_instance_norm_1d.1} parent=23 // pred_check
          %p182 = pneg %p35
        $region26: #{conditional_instance_norm_1d.1} parent=23 // pred_check_branch
          %184 = sbr.rel (%p182) target = $region28
        $region27: #{conditional_instance_norm_1d.1} parent=23 // pred_region
          %s185 = smul.u32 2, %s15
          %s186 = ssub.s32 7, %s185
          %p187 = scmp.lt.s32.totalorder %s186, 2
          %s188 = scalar_select %p187, %s186, 2
          %s189 = smul.u32 8, %s188
          %p190 = scmp.lt.s32.totalorder %s185, 6
          %s191 = scalar_select %p190, %s185, 6
          %s192 = smul.addr %s191, 8
          %s193 = scalar_lea.vmem %s0, %s192
          %s194 = smul.u32 2, %s15
          %s195 = ssub.s32 7, %s194
          %p196 = scmp.lt.s32.totalorder %s195, 2
          %s197 = scalar_select %p196, %s195, 2
          %s198 = smul.u32 8, %s197
        $region28: #{conditional_instance_norm_1d.1} parent=23 // pred_fallthru
          _
        // Predicated region
        $region29: #{conditional_instance_norm_1d.1} parent=23 // pred_check
          %p199 = pneg %p61
        $region30: #{conditional_instance_norm_1d.1} parent=23 // pred_check_branch
          %201 = sbr.rel (%p199) target = $region32
        $region31: #{conditional_instance_norm_1d.1} parent=23 // pred_region
          %s202 = smul.u32 2, %s15
          %s203 = ssub.s32 7, %s202
          %p204 = scmp.lt.s32.totalorder %s203, 2
          %s205 = scalar_select %p204, %s203, 2
          %s206 = smul.u32 8, %s205
          %p207 = scmp.lt.s32.totalorder %s202, 6
          %s208 = scalar_select %p207, %s202, 6
          %s209 = smul.addr %s208, 8
          %s210 = scalar_lea.vmem %s1, %s209
          %s211 = smul.u32 2, %s15
          %s212 = ssub.s32 7, %s211
          %p213 = scmp.lt.s32.totalorder %s212, 2
          %s214 = scalar_select %p213, %s212, 2
          %s215 = smul.u32 8, %s214
        $region32: #{conditional_instance_norm_1d.1} parent=23 // pred_fallthru
          _
      $region24: #{conditional_instance_norm_1d.1} parent=5 // pred_fallthru
        _
      %p216 = scmp.le.s32.totalorder 1, %s15
      %p217 = scmp.lt.s32.totalorder %s15, 5
      %p218 = pnand %p216, %p217
      %p219 = pneg %p218
      // Predicated region
      $region33: #{conditional_instance_norm_1d.1} parent=5 // pred_check
        _
      $region34: #{conditional_instance_norm_1d.1} parent=5 // pred_check_branch
        %221 = sbr.rel (%p218) target = $region36
      $region35: #{conditional_instance_norm_1d.1} parent=5 // pred_region
        %s222 = ssub.s32 %s15, 1
        // Predicated region
        $region37: #{conditional_instance_norm_1d.1} parent=35 // pred_check
          %p223 = pneg %p88
        $region38: #{conditional_instance_norm_1d.1} parent=35 // pred_check_branch
          %225 = sbr.rel (%p223) target = $region40
        $region39: #{conditional_instance_norm_1d.1} parent=35 // pred_region
          %227 = dma.done [#allocation3], 2048
        $region40: #{conditional_instance_norm_1d.1} parent=35 // pred_fallthru
          _
        // Predicated region
        $region41: #{conditional_instance_norm_1d.1} parent=35 // pred_check
          %p228 = pneg %p109
        $region42: #{conditional_instance_norm_1d.1} parent=35 // pred_check_branch
          %230 = sbr.rel (%p228) target = $region44
        $region43: #{conditional_instance_norm_1d.1} parent=35 // pred_region
          %232 = dma.done [#allocation6], 2048
        $region44: #{conditional_instance_norm_1d.1} parent=35 // pred_fallthru
          _
        %s233 = smul.u32 2, %s20
        %s234 = ssub.s32 7, %s233
        %p235 = scmp.lt.s32.totalorder %s234, 2
        %s236 = scalar_select %p235, %s234, 2
        %s237 = smul.u32 8, %s236
        %p238 = scmp.lt.s32.totalorder %s233, 6
        %s239 = scalar_select %p238, %s233, 6
        %s240 = smul.addr %s239, 8
        %s241 = scalar_lea.vmem %s0, %s240
        %p242 = pneg %p41
        %p243 = pneg %p38
        %s244 = smul.u32 2, %s20
        %s245 = ssub.s32 7, %s244
        %p246 = scmp.lt.s32.totalorder %s245, 2
        %s247 = scalar_select %p246, %s245, 2
        %s248 = smul.u32 8, %s247
        %p249 = scmp.lt.s32.totalorder %s244, 6
        %s250 = scalar_select %p249, %s244, 6
        %s251 = smul.addr %s250, 8
        %s252 = scalar_lea.vmem %s1, %s251
        %p253 = pneg %p67
        %p254 = pneg %p64
        %p255 = pneg %p88
        %p256 = pneg %p85
        %p257 = pneg %p109
        %p258 = pneg %p106
        %p259 = pneg %p135
        %p260 = pneg %p132
        %s261 = sand.u32 %s122, 1
        %s262 = scalar_lea.sflag [#allocation4], %s261
        %s263 = sand.u32 %s122, 1
        %s264 = smul.addr %s263, 16
        %s265 = scalar_lea.vmem [#allocation7], %s264
        %s266 = smul.u32 2, %s20
        %s267 = ssub.s32 7, %s266
        %p268 = scmp.lt.s32.totalorder %s267, 2
        %s269 = scalar_select %p268, %s267, 2
        %s270 = smul.u32 8, %s269
        %p271 = scmp.lt.s32.totalorder %s266, 6
        %s272 = scalar_select %p271, %s266, 6
        %s273 = smul.addr %s272, 8
        %s274 = scalar_lea.vmem %s0, %s273
        %s275 = smul.u32 2, %s20
        %s276 = ssub.s32 7, %s275
        %p277 = scmp.lt.s32.totalorder %s276, 2
        %s278 = scalar_select %p277, %s276, 2
        %s279 = smul.u32 8, %s278
        %s280 = smul.u32 2, %s20
        %s281 = ssub.s32 7, %s280
        %p282 = scmp.lt.s32.totalorder %s281, 2
        %s283 = scalar_select %p282, %s281, 2
        %s284 = smul.u32 8, %s283
        %p285 = scmp.lt.s32.totalorder %s280, 6
        %s286 = scalar_select %p285, %s280, 6
        %s287 = smul.addr %s286, 8
        %s288 = scalar_lea.vmem %s1, %s287
        %s289 = smul.u32 2, %s20
        %s290 = ssub.s32 7, %s289
        %p291 = scmp.lt.s32.totalorder %s290, 2
        %s292 = scalar_select %p291, %s290, 2
        %s293 = smul.u32 8, %s292
        %s294 = smul.u32 2, %s20
        %s295 = ssub.s32 7, %s294
        %p296 = scmp.lt.s32.totalorder %s295, 2
        %s297 = scalar_select %p296, %s295, 2
        %s298 = smul.u32 8, %s297
        %v299 = vld [vmem:[%s288] sm:$0xff]
        %v300 = vld [vmem:[%s288 + $0x8] sm:$0xff]
        %301 = vadd.xlane.f32.xlu0 %v299
        %v302 = vpop.xlane.xlu0 %301
        %303 = vadd.xlane.f32.xlu0 %v300
        %v304 = vpop.xlane.xlu0 %303
        %v305 = vmul.f32 %v302, 0.0078125
        %v306 = vmul.f32 %v304, 0.0078125
        %v307 = vsub.f32 %v299, %v305
        %v308 = vsub.f32 %v300, %v306
        %v309 = vmul.f32 %v307, %v307
        %v310 = vmul.f32 %v308, %v308
        %311 = vadd.xlane.f32.xlu0 %v309
        %v312 = vpop.xlane.xlu0 %311
        %313 = vadd.xlane.f32.xlu0 %v310
        %v314 = vpop.xlane.xlu0 %313
        %v315 = vmul.f32 %v312, 0.0078125
        %v316 = vmul.f32 %v314, 0.0078125
        %v317 = vadd.f32 %v315, 1e-05
        %v318 = vadd.f32 %v316, 1e-05
        %v319 = vrsqrt.pop %v317
        %v320 = vmul.f32 %v319, %v317
        %v321 = vmul.f32 %v320, %v319
        %v322 = vmul.f32 0.5, %v321
        %v323 = vsub.f32 1.5, %v322
        %v324 = vmul.f32 %v319, %v323
        %vm325 = vweird.f32 %v317
        %vm326 = vweird.f32 %v319
        %vm327 = vmor %vm325, %vm326
        %v328 = vsel %vm327, %v319, %v324
        %v329 = vrsqrt.pop %v318
        %v330 = vmul.f32 %v329, %v318
        %v331 = vmul.f32 %v330, %v329
        %v332 = vmul.f32 0.5, %v331
        %v333 = vsub.f32 1.5, %v332
        %v334 = vmul.f32 %v329, %v333
        %vm335 = vweird.f32 %v318
        %vm336 = vweird.f32 %v329
        %vm337 = vmor %vm335, %vm336
        %v338 = vsel %vm337, %v329, %v334
        %v339 = vmul.f32 %v307, %v328
        %v340 = vmul.f32 %v308, %v338
        %v341 = vld [vmem:[%s274] sm:$0xff]
        %v342 = vld [vmem:[%s274 + $0x8] sm:$0xff]
        %v343 = vlaneseq
        %v344 = vand.u32 %v343, 127
        %345 = vset.pattern.permute.xlu0 0
        %346 = vperm.xlu0 %345, %v341
        %v347 = vpop.permute.xlu0 %346
        %348 = vset.pattern.permute.xlu0 0
        %349 = vperm.xlu0 %348, %v342
        %v350 = vpop.permute.xlu0 %349
        %vm351 = vcmp.eq.s32.totalorder %v347, %v344
        %vm352 = vcmp.eq.s32.totalorder %v350, %v344
        %v353 = vsel %vm351, 1, 0
        %v354 = vsel %vm352, 1, 0
        %v355 = vcvt.s32.f32 %v353
        %v356 = vcvt.s32.f32 %v354
        %v357 = vld [vmem:[#allocation2] sm:$0xff]
        %v358 = vld [vmem:[#allocation2 + $0x8] sm:$0xff]
        %v359 = vld [vmem:[#allocation2 + $0x10] sm:$0xff]
        %v360 = vld [vmem:[#allocation2 + $0x18] sm:$0xff]
        %v361 = vld [vmem:[#allocation2 + $0x20] sm:$0xff]
        %v362 = vld [vmem:[#allocation2 + $0x28] sm:$0xff]
        %v363 = vld [vmem:[#allocation2 + $0x30] sm:$0xff]
        %v364 = vld [vmem:[#allocation2 + $0x38] sm:$0xff]
        %v365 = vld [vmem:[#allocation2 + $0x40] sm:$0xff]
        %v366 = vld [vmem:[#allocation2 + $0x48] sm:$0xff]
        %v367 = vld [vmem:[#allocation2 + $0x50] sm:$0xff]
        %v368 = vld [vmem:[#allocation2 + $0x58] sm:$0xff]
        %v369 = vld [vmem:[#allocation2 + $0x60] sm:$0xff]
        %v370 = vld [vmem:[#allocation2 + $0x68] sm:$0xff]
        %v371 = vld [vmem:[#allocation2 + $0x70] sm:$0xff]
        %v372 = vld [vmem:[#allocation2 + $0x78] sm:$0xff]
        %373 = vmatpush.msra.mxu0 %v372
        %374 = vmatpush.msra.mxu0 %v371
        %375 = vmatpush.msra.mxu0 %v370
        %376 = vmatpush.msra.mxu0 %v369
        %377 = vmatpush.msra.mxu0 %v368
        %378 = vmatpush.msra.mxu0 %v367
        %379 = vmatpush.msra.mxu0 %v366
        %380 = vmatpush.msra.mxu0 %v365
        %381 = vmatpush.msra.mxu0 %v364
        %382 = vmatpush.msra.mxu0 %v363
        %383 = vmatpush.msra.mxu0 %v362
        %384 = vmatpush.msra.mxu0 %v361
        %385 = vmatpush.msra.mxu0 %v360
        %386 = vmatpush.msra.mxu0 %v359
        %387 = vmatpush.msra.mxu0 %v358
        %388 = vmatpush.msra.mxu0 %v357
        %389 = vmatmul.f32.gmra.mxu0 %v355
        %v390 = vpop.f32.mrf.mxu0
        %v391 = vadd.f32 0.0, %v390
        %392 = vmatmul.f32.gmra.mxu0 %v356
        %v393 = vpop.f32.mrf.mxu0
        %v394 = vadd.f32 0.0, %v393
        %395 = vdwg.mxu0
        %v396 = vmul.f32 %v391, %v339
        %v397 = vmul.f32 %v394, %v340
        %v398 = vld [vmem:[#allocation5] sm:$0xff]
        %v399 = vld [vmem:[#allocation5 + $0x8] sm:$0xff]
        %v400 = vld [vmem:[#allocation5 + $0x10] sm:$0xff]
        %v401 = vld [vmem:[#allocation5 + $0x18] sm:$0xff]
        %v402 = vld [vmem:[#allocation5 + $0x20] sm:$0xff]
        %v403 = vld [vmem:[#allocation5 + $0x28] sm:$0xff]
        %v404 = vld [vmem:[#allocation5 + $0x30] sm:$0xff]
        %v405 = vld [vmem:[#allocation5 + $0x38] sm:$0xff]
        %v406 = vld [vmem:[#allocation5 + $0x40] sm:$0xff]
        %v407 = vld [vmem:[#allocation5 + $0x48] sm:$0xff]
        %v408 = vld [vmem:[#allocation5 + $0x50] sm:$0xff]
        %v409 = vld [vmem:[#allocation5 + $0x58] sm:$0xff]
        %v410 = vld [vmem:[#allocation5 + $0x60] sm:$0xff]
        %v411 = vld [vmem:[#allocation5 + $0x68] sm:$0xff]
        %v412 = vld [vmem:[#allocation5 + $0x70] sm:$0xff]
        %v413 = vld [vmem:[#allocation5 + $0x78] sm:$0xff]
        %414 = vmatpush.msra.mxu0 %v413
        %415 = vmatpush.msra.mxu0 %v412
        %416 = vmatpush.msra.mxu0 %v411
        %417 = vmatpush.msra.mxu0 %v410
        %418 = vmatpush.msra.mxu0 %v409
        %419 = vmatpush.msra.mxu0 %v408
        %420 = vmatpush.msra.mxu0 %v407
        %421 = vmatpush.msra.mxu0 %v406
        %422 = vmatpush.msra.mxu0 %v405
        %423 = vmatpush.msra.mxu0 %v404
        %424 = vmatpush.msra.mxu0 %v403
        %425 = vmatpush.msra.mxu0 %v402
        %426 = vmatpush.msra.mxu0 %v401
        %427 = vmatpush.msra.mxu0 %v400
        %428 = vmatpush.msra.mxu0 %v399
        %429 = vmatpush.msra.mxu0 %v398
        %430 = vmatmul.f32.gmra.mxu0 %v355
        %v431 = vpop.f32.mrf.mxu0
        %v432 = vadd.f32 0.0, %v431
        %433 = vmatmul.f32.gmra.mxu0 %v356
        %v434 = vpop.f32.mrf.mxu0
        %v435 = vadd.f32 0.0, %v434
        %436 = vdwg.mxu0
        %v437 = vadd.f32 %v396, %v432
        %v438 = vadd.f32 %v397, %v435
        %439 = vst [vmem:[%s265] sm:$0xff] %v437
        %440 = vst [vmem:[%s265 + $0x8] sm:$0xff] %v438
        %s441 = sand.u32 %s122, 1
        %s442 = scalar_lea.sflag [#allocation4], %s441
        %s443 = sand.u32 %s122, 1
        %s444 = smul.addr %s443, 16
        %s445 = scalar_lea.vmem [#allocation7], %s444
        // Predicated region
        $region45: #{conditional_instance_norm_1d.1} parent=35 // pred_check
          %p446 = pneg %p132
        $region46: #{conditional_instance_norm_1d.1} parent=35 // pred_check_branch
          %448 = sbr.rel (%p446) target = $region48
        $region47: #{conditional_instance_norm_1d.1} parent=35 // pred_region
          %s449 = smul.u32 2, %s20
          %s450 = ssub.s32 7, %s449
          %p451 = scmp.lt.s32.totalorder %s450, 2
          %s452 = scalar_select %p451, %s450, 2
          %s453 = smul.u32 8, %s452
          %s454 = ssub.s32 16, %s453
          %s455 = sshll.u32 %s454, 4
          %456 = vsyncadd %s442, %s455
          %p457 = scmp.ne.s32.totalorder 0, %s453
          %s458 = smul.addr %s449, 8
          %s459 = scalar_lea.hbm %s4, %s458
          %s460 = smul.u32 8, %s452
          %s461 = sshll.u32 %s445, 4
          %s462 = int_to_ptr.vmem [resolvable:$true] %s461
          %s463 = sshll.u32 %s459, 4
          %s464 = int_to_ptr.hbm [resolvable:$true] %s463
          %s465 = sshll.u32 %s460, 4
          %469 = dma.vmem_to_hbm [thread:$0]  (%p457), %s462, %s465, %s464, %s442, 128, 128, 8
        $region48: #{conditional_instance_norm_1d.1} parent=35 // pred_fallthru
          _
      $region36: #{conditional_instance_norm_1d.1} parent=5 // pred_fallthru
        _
      %p470 = scmp.le.s32.totalorder 2, %s15
      // Predicated region
      $region49: #{conditional_instance_norm_1d.1} parent=5 // pred_check
        %p471 = pneg %p470
      $region50: #{conditional_instance_norm_1d.1} parent=5 // pred_check_branch
        %473 = sbr.rel (%p471) target = $region52
      $region51: #{conditional_instance_norm_1d.1} parent=5 // pred_region
        %s474 = ssub.s32 %s15, 2
        // Predicated region
        $region53: #{conditional_instance_norm_1d.1} parent=51 // pred_check
          %p475 = pneg %p138
        $region54: #{conditional_instance_norm_1d.1} parent=51 // pred_check_branch
          %477 = sbr.rel (%p475) target = $region56
        $region55: #{conditional_instance_norm_1d.1} parent=51 // pred_region
          %s478 = sand.u32 %s123, 1
          %s479 = scalar_lea.sflag [#allocation4], %s478
          %s480 = sand.u32 %s123, 1
          %s481 = smul.addr %s480, 16
          %s482 = scalar_lea.vmem [#allocation7], %s481
          %484 = dma.done %s479, 256
        $region56: #{conditional_instance_norm_1d.1} parent=51 // pred_fallthru
          _
      $region52: #{conditional_instance_norm_1d.1} parent=5 // pred_fallthru
        _
    $region6: #{conditional_instance_norm_1d.1} parent=1 // loop_footer
      %s19 = sadd.s32 1, %s15
    $region7: #{conditional_instance_norm_1d.1} parent=1 // loop_footer_branch
      %14 = sbr.rel target = $region3
    $region8: #{conditional_instance_norm_1d.1} parent=1 // loop_exit
      _
    %485 = vsyncpa [#allocation3], 1
    %s486 = scalar_lea.sflag [#allocation3], 1
    %487 = vsyncpa %s486, 1
    %488 = vsyncpa [#allocation6], 1
    %489 = vsyncpa [#allocation4], 1
    %s490 = scalar_lea.sflag [#allocation4], 1
    %491 = vsyncpa %s490, 1

</llo_original>
